<compile_context>
chip_gen: v5e
topology: v5e:2x2
jax: 0.10.0
libtpu: 0.0.40
codegen_flags: <defaults>
</compile_context>

<pallas_src>
import functools

import jax
import jax.numpy as jnp
from jax.experimental import pallas as pl
from jax.experimental.pallas import tpu as pltpu


def _round_up(x, m):
    return ((x + m - 1) // m) * m


def _bottleneck_kernel(x_ref, wt_ref, nw_ref, eb_ref, inp_ref, attn_ref):
    """One row tile:
         y = (x_tile @ W_cat^T) * nonorm_w + eff_bias      (all-f32 epilogue)
    then split the 2D output lanes into the two BottleneckLayer outputs.
    The split lands exactly on a 128-lane boundary (D = 128k) -> free."""
    y = jnp.dot(x_ref[...], wt_ref[...], preferred_element_type=jnp.float32)
    y = y * nw_ref[...] + eb_ref[...]
    d = inp_ref.shape[-1]
    inp_ref[...] = y[:, :d].astype(inp_ref.dtype)      # "input" layer (bottlenecked)
    attn_ref[...] = y[:, d:].astype(attn_ref.dtype)    # "attention" layer


def fused_double_bottleneck(x2d, wt_cat, nw_cat, eff_b_cat, out_dtype, *, tm=512):
    """Row-streaming fused (Linear + NoNorm) for BOTH BottleneckLayers.

    x2d:       (R, H)      activations (rows = batch*seq), ideally bf16
    wt_cat:    (H, 2D)     concatenated transposed weights (bf16, resident)
    nw_cat:    (1, 2D)     concatenated NoNorm weights (f32)
    eff_b_cat: (1, 2D)     fused bias b*nw + nb (f32)
    returns (bottlenecked (R, D), attention (R, D)) in out_dtype.
    """
    R, H = x2d.shape
    Hw, N2 = wt_cat.shape
    assert H == Hw and N2 % 256 == 0
    D = N2 // 2

    # Row tile: multiple of 8, clamped to the problem size; keep >= 2 row
    # tiles when possible so v7x's two TensorCores both get work. At tm=512
    # bf16, double-buffered x + resident W^T is well under all scoped VMEM
    # defaults (16 MiB v5e / 32 MiB v6e,v7x).
    tm = max(8, min(tm, _round_up(R, 8)))
    if R > 8:
        tm = min(tm, _round_up(-(-R // 2), 8))
    grid = (pl.cdiv(R, tm),)

    flops = 2 * R * H * N2
    bytes_accessed = (
        R * H * x2d.dtype.itemsize
        + H * N2 * wt_cat.dtype.itemsize
        + 2 * N2 * 4
        + 2 * R * D * jnp.dtype(out_dtype).itemsize
    )

    bottlenecked, attention = pl.pallas_call(
        _bottleneck_kernel,
        out_shape=(
            jax.ShapeDtypeStruct((R, D), out_dtype),
            jax.ShapeDtypeStruct((R, D), out_dtype),
        ),
        grid=grid,
        in_specs=[
            pl.BlockSpec((tm, H), lambda i: (i, 0)),    # activations, row-streamed
            pl.BlockSpec((H, N2), lambda i: (0, 0)),    # W^T resident in VMEM
            pl.BlockSpec((1, N2), lambda i: (0, 0)),    # NoNorm weight (f32)
            pl.BlockSpec((1, N2), lambda i: (0, 0)),    # fused bias (f32)
        ],
        out_specs=(
            pl.BlockSpec((tm, D), lambda i: (i, 0)),
            pl.BlockSpec((tm, D), lambda i: (i, 0)),
        ),
        compiler_params=pltpu.CompilerParams(
            dimension_semantics=("parallel",),
        ),
        cost_estimate=pl.CostEstimate(
            flops=flops, transcendentals=0, bytes_accessed=bytes_accessed
        ),
    )(x2d, wt_cat, nw_cat, eff_b_cat)
    return bottlenecked, attention


def prepare_bottleneck_params(
    w_input, b_input, nw_input, nb_input,
    w_attn, b_attn, nw_attn, nb_attn,
    *, weight_dtype=jnp.bfloat16,
):
    """One-time (per model) parameter prep, hoisted out of the forward path:
    concat the two layers along the output dim, transpose to (H, 2D), cast the
    matmul weights to bf16, and fold the Linear bias into the NoNorm bias."""
    D = w_input.shape[0]
    w_cat = jnp.concatenate([w_input, w_attn], axis=0)               # (2D, H)
    wt_cat = jnp.transpose(w_cat).astype(weight_dtype)                # (H, 2D)
    nw_cat = jnp.concatenate([nw_input, nw_attn]).astype(jnp.float32)
    eff_b = jnp.concatenate(
        [b_input * nw_input + nb_input, b_attn * nw_attn + nb_attn]
    ).astype(jnp.float32)
    return {
        "wt_cat": wt_cat,
        "nw_cat": nw_cat.reshape(1, 2 * D),
        "eff_b_cat": eff_b.reshape(1, 2 * D),
    }


@functools.partial(jax.jit, static_argnames=("compute_dtype",))
def bottleneck_forward(x, params, *, compute_dtype=jnp.bfloat16):
    """Full Bottleneck.forward: returns
    (shared_attention, shared_attention, x, bottlenecked_hidden_states)."""
    B, S, H = x.shape
    D = params["wt_cat"].shape[1] // 2
    out_dtype = x.dtype
    # bf16 activations halve x's HBM traffic inside the (mem-bound) kernel;
    # no-op if the caller already supplies bf16.
    x2d = x.reshape(B * S, H).astype(compute_dtype)
    bottlenecked, attention = fused_double_bottleneck(
        x2d, params["wt_cat"], params["nw_cat"], params["eff_b_cat"], out_dtype
    )
    bottlenecked = bottlenecked.reshape(B, S, D)
    shared_attention = attention.reshape(B, S, D)
    return (shared_attention, shared_attention, x, bottlenecked)


if __name__ == "__main__":
    # Shapes consistent with the module defaults:
    # hidden_size=512, intra_bottleneck_dim=128; small batch/seq.
    B, S = 2, 8
    H, D = 512, 128

    key = jax.random.PRNGKey(0)
    ks = jax.random.split(key, 9)

    x = jax.random.normal(ks[0], (B, S, H), dtype=jnp.float32)
    scale = 1.0 / jnp.sqrt(jnp.float32(H))

    # "input" BottleneckLayer params
    w_input = scale * jax.random.normal(ks[1], (D, H), dtype=jnp.float32)
    b_input = 0.1 * jax.random.normal(ks[2], (D,), dtype=jnp.float32)
    nw_input = jnp.ones((D,), jnp.float32) + 0.1 * jax.random.normal(ks[3], (D,), jnp.float32)
    nb_input = 0.1 * jax.random.normal(ks[4], (D,), dtype=jnp.float32)

    # "attention" BottleneckLayer params
    w_attn = scale * jax.random.normal(ks[5], (D, H), dtype=jnp.float32)
    b_attn = 0.1 * jax.random.normal(ks[6], (D,), dtype=jnp.float32)
    nw_attn = jnp.ones((D,), jnp.float32) + 0.1 * jax.random.normal(ks[7], (D,), jnp.float32)
    nb_attn = 0.1 * jax.random.normal(ks[8], (D,), dtype=jnp.float32)

    params = prepare_bottleneck_params(
        w_input, b_input, nw_input, nb_input,
        w_attn, b_attn, nw_attn, nb_attn,
    )

    outs = bottleneck_forward(x, params)
    outs = jax.block_until_ready(outs)
    shared_attention, shared_attention2, x_back, bottlenecked = outs

    # Plain-JAX reference (same semantics as the PyTorch module).
    def ref_layer(xx, w, b, nw, nb):
        h = jnp.einsum("bsh,dh->bsd", xx, w,
                       precision=jax.lax.Precision.HIGHEST) + b
        return h * nw + nb

    ref_bottlenecked = ref_layer(x, w_input, b_input, nw_input, nb_input)
    ref_attention = ref_layer(x, w_attn, b_attn, nw_attn, nb_attn)

    assert shared_attention.shape == (B, S, D)
    assert shared_attention2.shape == (B, S, D)
    assert bottlenecked.shape == (B, S, D)
    assert x_back.shape == (B, S, H)
    assert jnp.array_equal(x_back, x)
    assert jnp.array_equal(shared_attention, shared_attention2)
    # bf16 activations/weights with f32 accumulation fit within this tolerance.
    assert jnp.allclose(shared_attention, ref_attention, atol=2e-2, rtol=2e-2)
    assert jnp.allclose(bottlenecked, ref_bottlenecked, atol=2e-2, rtol=2e-2)

    print("KERNEL_OK")
</pallas_src>

<mosaic_0001>
module attributes {stable_mosaic.version = 11 : i64} {
  func.func @_bottleneck_kernel(%arg0: i32, %arg1: memref<8x512xbf16, #tpu.memory_space<vmem>>, %arg2: memref<512x256xbf16, #tpu.memory_space<vmem>>, %arg3: memref<1x256xf32, #tpu.memory_space<vmem>>, %arg4: memref<1x256xf32, #tpu.memory_space<vmem>>, %arg5: memref<8x128xf32, #tpu.memory_space<vmem>>, %arg6: memref<8x128xf32, #tpu.memory_space<vmem>>) attributes {dimension_semantics = [#tpu.dimension_semantics<parallel>], iteration_bounds = array<i64: 2>, scalar_prefetch = 0 : i64, scratch_operands = 0 : i64, tpu.core_type = #tpu.core_type<tc>, window_params = [{transform_indices = @transform_0, window_bounds = array<i64: 8, 512>}, {pipeline_mode = #tpu.pipeline_mode<synchronous>, transform_indices = @transform_1, window_bounds = array<i64: 512, 256>}, {pipeline_mode = #tpu.pipeline_mode<synchronous>, transform_indices = @transform_2, window_bounds = array<i64: 1, 256>}, {pipeline_mode = #tpu.pipeline_mode<synchronous>, transform_indices = @transform_3, window_bounds = array<i64: 1, 256>}, {transform_indices = @transform_4, window_bounds = array<i64: 8, 128>}, {transform_indices = @transform_5, window_bounds = array<i64: 8, 128>}]} {
    %c0 = arith.constant 0 : index
    %c0_0 = arith.constant 0 : index
    %0 = vector.load %arg1[%c0, %c0_0] : memref<8x512xbf16, #tpu.memory_space<vmem>>, vector<8x512xbf16>
    %c0_1 = arith.constant 0 : index
    %c0_2 = arith.constant 0 : index
    %1 = vector.load %arg2[%c0_1, %c0_2] : memref<512x256xbf16, #tpu.memory_space<vmem>>, vector<512x256xbf16>
    %cst = arith.constant dense<0.000000e+00> : vector<8x256xf32>
    %2 = tpu.matmul %0, %1, %cst {dimension_numbers = #tpu.dot_dimension_numbers<[1], [0], [0], [1], [0, 0, 1, 1], [], []>} : vector<8x512xbf16>, vector<512x256xbf16>, vector<8x256xf32> -> vector<8x256xf32>
    %c0_3 = arith.constant 0 : index
    %c0_4 = arith.constant 0 : index
    %3 = vector.load %arg3[%c0_3, %c0_4] : memref<1x256xf32, #tpu.memory_space<vmem>>, vector<1x256xf32>
    %4 = vector.broadcast %3 : vector<1x256xf32> to vector<8x256xf32>
    %5 = arith.mulf %2, %4 : vector<8x256xf32>
    %c0_5 = arith.constant 0 : index
    %c0_6 = arith.constant 0 : index
    %6 = vector.load %arg4[%c0_5, %c0_6] : memref<1x256xf32, #tpu.memory_space<vmem>>, vector<1x256xf32>
    %7 = vector.broadcast %6 : vector<1x256xf32> to vector<8x256xf32>
    %8 = arith.addf %5, %7 : vector<8x256xf32>
    %9 = vector.extract_strided_slice %8 {offsets = [0, 0], sizes = [8, 128], strides = [1, 1]} : vector<8x256xf32> to vector<8x128xf32>
    %c0_7 = arith.constant 0 : index
    %c0_8 = arith.constant 0 : index
    %10 = vector.load %arg5[%c0_7, %c0_8] : memref<8x128xf32, #tpu.memory_space<vmem>>, vector<8x128xf32>
    tpu.vector_store %arg5[%c0_7, %c0_8], %9 {strides = array<i32>} : memref<8x128xf32, #tpu.memory_space<vmem>>, vector<8x128xf32>,
    %11 = vector.extract_strided_slice %8 {offsets = [0, 128], sizes = [8, 128], strides = [1, 1]} : vector<8x256xf32> to vector<8x128xf32>
    %c0_9 = arith.constant 0 : index
    %c0_10 = arith.constant 0 : index
    %12 = vector.load %arg6[%c0_9, %c0_10] : memref<8x128xf32, #tpu.memory_space<vmem>>, vector<8x128xf32>
    tpu.vector_store %arg6[%c0_9, %c0_10], %11 {strides = array<i32>} : memref<8x128xf32, #tpu.memory_space<vmem>>, vector<8x128xf32>,
    return
  }
  func.func @transform_0(%arg0: i32) -> (i32, i32) {
    %c0_i32 = arith.constant 0 : i32
    %c0_i32_0 = arith.constant 0 : i32
    return %arg0, %c0_i32 : i32, i32
  }
  func.func @transform_1(%arg0: i32) -> (i32, i32) {
    %c0_i32 = arith.constant 0 : i32
    %c0_i32_0 = arith.constant 0 : i32
    %c0_i32_1 = arith.constant 0 : i32
    return %c0_i32, %c0_i32_0 : i32, i32
  }
  func.func @transform_2(%arg0: i32) -> (i32, i32) {
    %c0_i32 = arith.constant 0 : i32
    %c0_i32_0 = arith.constant 0 : i32
    %c0_i32_1 = arith.constant 0 : i32
    return %c0_i32, %c0_i32_0 : i32, i32
  }
  func.func @transform_3(%arg0: i32) -> (i32, i32) {
    %c0_i32 = arith.constant 0 : i32
    %c0_i32_0 = arith.constant 0 : i32
    %c0_i32_1 = arith.constant 0 : i32
    return %c0_i32, %c0_i32_0 : i32, i32
  }
  func.func @transform_4(%arg0: i32) -> (i32, i32) {
    %c0_i32 = arith.constant 0 : i32
    %c0_i32_0 = arith.constant 0 : i32
    return %arg0, %c0_i32 : i32, i32
  }
  func.func @transform_5(%arg0: i32) -> (i32, i32) {
    %c0_i32 = arith.constant 0 : i32
    %c0_i32_0 = arith.constant 0 : i32
    return %arg0, %c0_i32 : i32, i32
  }
}

</mosaic_0001>

<llo_original>
// kernel: bottleneck_forward.1
$region0: #{bottleneck_forward.1}
  #allocation0 [shape = 'u32[]', space=smem, size = 0x4, offset = 0x4, fixed_abs, tag = 'smem constant byte address 0x4 - core index']
  #allocation1 [shape = 'u32[72,128]{1,0:T(1,128)}', space=vmem, size = 0x9000, scoped, tag = 'internal scratch']
  %s0 = inlined_call_operand.vmem [shape: bf16[16,512], index: 0, kind: input, shape index: {}]
  %s1 = inlined_call_operand.hbm [shape: bf16[512,256], index: 1, kind: input, shape index: {}]
  %s2 = inlined_call_operand.vmem [shape: f32[1,256], index: 2, kind: input, shape index: {}]
  %s3 = inlined_call_operand.vmem [shape: f32[1,256], index: 3, kind: input, shape index: {}]
  %s4 = inlined_call_operand.hbm [shape: f32[16,128], index: 4, kind: output, shape index: {0}]
  %s5 = inlined_call_operand.vmem [shape: f32[16,128], index: 5, kind: output, shape index: {1}]
  %6 = xla_tuple %s4, %s5
  %s7 = sld [smem:[#allocation0]]
  $region61: #{bottleneck_forward.1} parent=0
    _
  %s9 = ssub.s32 1, %s7
  %s10 = scalar_select 0, %s9, %s7
  $region1: #{bottleneck_forward.1} parent=0
    #allocation2 [shape = 'u8[262144]{0}', space=vmem, size = 0x40000, scoped, tag = 'input window, operand 1, single buffered']
    #allocation3 [shape = 's32[2]{0}', space=sflag, size = 0x8, scoped, tag = 'scoped memory for bottleneck_forward.1']
    #allocation4 [shape = 's32[2]{0}', space=sflag, size = 0x8, scoped, tag = 'scoped memory for bottleneck_forward.1']
    #allocation5 [shape = 'u8[8192]{0}', space=vmem, size = 0x2000, scoped, tag = 'output window, operand 0']
    %11 = vsyncpa [#allocation3], 0
    %12 = vsyncpa [#allocation4], 0
    %s13 = scalar_lea.sflag [#allocation4], 1
    %14 = vsyncpa %s13, 0
    loop: start=0, step=1, limit=4
    $region2: #{bottleneck_forward.1} parent=1 // loop_pre_header
      _
    $region3: #{bottleneck_forward.1} parent=1 // loop_header
      %s16 = sphi 0, %s20
      %p17 = scmp.ge.s32.totalorder %s16, 4
      %s26 = sphi 0, %s28
      %s29 = sphi 0, %s26
      %s30 = sphi 0, %s29
      %s46 = sphi 0, %s30
      %s50 = sphi 0, %s50
      %s52 = sphi 0, %s50
      %s53 = sphi 0, %s52
      %s67 = sphi 0, %s53
      %s71 = sphi 0, %s71
      %s73 = sphi 0, %s71
      %s74 = sphi 0, %s73
      %s88 = sphi 0, %s74
      %s92 = sphi 0, %s92
      %s94 = sphi 0, %s92
      %s95 = sphi 0, %s94
      %s109 = sphi 0, %s95
      %s115 = sphi 0, %s117
      %s118 = sphi 0, %s115
      %s119 = sphi 0, %s118
      %s135 = sphi 0, %s119
      %s141 = sphi 0, %s143
      %s144 = sphi 0, %s141
      %s145 = sphi 0, %s144
      %s161 = sphi 0, %s145
    $region4: #{bottleneck_forward.1} parent=1 // loop_header_branch
      %19 = sbr.rel (%p17) target = $region8
    $region5: #{bottleneck_forward.1} parent=1 // loop_body
      %s21 = ssub.s32 %s16, 1
      %s22 = ssub.s32 %s16, 2
      %s23 = sadd.s32 %s16, 1
      %s24 = ssub.s32 %s16, %s23
      %p25 = scmp.eq.s32.totalorder %s24, 0
      %s27 = sadd.s32 %s26, 1
      %s28 = scalar_select %p25, %s26, %s27
      %p31 = pneg %p25
      %p32 = scmp.eq.s32.totalorder %s16, 1
      %p33 = por %p31, %p32
      %p34 = scmp.ne.s32.totalorder %s26, %s29
      %p35 = scmp.eq.s32.totalorder %s16, 0
      %p36 = por %p34, %p35
      %p37 = scmp.ne.s32.totalorder %s26, %s29
      %p38 = scmp.eq.s32.totalorder %s21, 1
      %p39 = por %p37, %p38
      %p40 = scmp.ne.s32.totalorder %s29, %s30
      %p41 = scmp.eq.s32.totalorder %s21, 0
      %p42 = por %p40, %p41
      %p43 = scmp.ne.s32.totalorder %s29, %s30
      %p44 = scmp.eq.s32.totalorder %s22, 1
      %p45 = por %p43, %p44
      %p47 = scmp.ne.s32.totalorder %s30, %s46
      %p48 = scmp.eq.s32.totalorder %s22, 0
      %p49 = por %p47, %p48
      %s51 = sadd.s32 %s50, 1
      %p54 = scmp.eq.s32.totalorder %s16, 1
      %p55 = scmp.ne.s32.totalorder %s50, %s52
      %p56 = scmp.eq.s32.totalorder %s16, 0
      %p57 = por %p55, %p56
      %p58 = scmp.ne.s32.totalorder %s50, %s52
      %p59 = scmp.eq.s32.totalorder %s21, 1
      %p60 = por %p58, %p59
      %p61 = scmp.ne.s32.totalorder %s52, %s53
      %p62 = scmp.eq.s32.totalorder %s21, 0
      %p63 = por %p61, %p62
      %p64 = scmp.ne.s32.totalorder %s52, %s53
      %p65 = scmp.eq.s32.totalorder %s22, 1
      %p66 = por %p64, %p65
      %p68 = scmp.ne.s32.totalorder %s53, %s67
      %p69 = scmp.eq.s32.totalorder %s22, 0
      %p70 = por %p68, %p69
      %s72 = sadd.s32 %s71, 1
      %p75 = scmp.eq.s32.totalorder %s16, 1
      %p76 = scmp.ne.s32.totalorder %s71, %s73
      %p77 = scmp.eq.s32.totalorder %s16, 0
      %p78 = por %p76, %p77
      %p79 = scmp.ne.s32.totalorder %s71, %s73
      %p80 = scmp.eq.s32.totalorder %s21, 1
      %p81 = por %p79, %p80
      %p82 = scmp.ne.s32.totalorder %s73, %s74
      %p83 = scmp.eq.s32.totalorder %s21, 0
      %p84 = por %p82, %p83
      %p85 = scmp.ne.s32.totalorder %s73, %s74
      %p86 = scmp.eq.s32.totalorder %s22, 1
      %p87 = por %p85, %p86
      %p89 = scmp.ne.s32.totalorder %s74, %s88
      %p90 = scmp.eq.s32.totalorder %s22, 0
      %p91 = por %p89, %p90
      %s93 = sadd.s32 %s92, 1
      %p96 = scmp.eq.s32.totalorder %s16, 1
      %p97 = scmp.ne.s32.totalorder %s92, %s94
      %p98 = scmp.eq.s32.totalorder %s16, 0
      %p99 = por %p97, %p98
      %p100 = scmp.ne.s32.totalorder %s92, %s94
      %p101 = scmp.eq.s32.totalorder %s21, 1
      %p102 = por %p100, %p101
      %p103 = scmp.ne.s32.totalorder %s94, %s95
      %p104 = scmp.eq.s32.totalorder %s21, 0
      %p105 = por %p103, %p104
      %p106 = scmp.ne.s32.totalorder %s94, %s95
      %p107 = scmp.eq.s32.totalorder %s22, 1
      %p108 = por %p106, %p107
      %p110 = scmp.ne.s32.totalorder %s95, %s109
      %p111 = scmp.eq.s32.totalorder %s22, 0
      %p112 = por %p110, %p111
      %s113 = ssub.s32 %s16, %s23
      %p114 = scmp.eq.s32.totalorder %s113, 0
      %s116 = sadd.s32 %s115, 1
      %s117 = scalar_select %p114, %s115, %s116
      %p120 = pneg %p114
      %p121 = scmp.eq.s32.totalorder %s16, 1
      %p122 = por %p120, %p121
      %p123 = scmp.ne.s32.totalorder %s115, %s118
      %p124 = scmp.eq.s32.totalorder %s16, 0
      %p125 = por %p123, %p124
      %p126 = scmp.ne.s32.totalorder %s115, %s118
      %p127 = scmp.eq.s32.totalorder %s21, 1
      %p128 = por %p126, %p127
      %p129 = scmp.ne.s32.totalorder %s118, %s119
      %p130 = scmp.eq.s32.totalorder %s21, 0
      %p131 = por %p129, %p130
      %p132 = scmp.ne.s32.totalorder %s118, %s119
      %p133 = scmp.eq.s32.totalorder %s22, 1
      %p134 = por %p132, %p133
      %p136 = scmp.ne.s32.totalorder %s119, %s135
      %p137 = scmp.eq.s32.totalorder %s22, 0
      %p138 = por %p136, %p137
      %s139 = ssub.s32 %s16, %s23
      %p140 = scmp.eq.s32.totalorder %s139, 0
      %s142 = sadd.s32 %s141, 1
      %s143 = scalar_select %p140, %s141, %s142
      %p146 = pneg %p140
      %p147 = scmp.eq.s32.totalorder %s16, 1
      %p148 = por %p146, %p147
      %p149 = scmp.ne.s32.totalorder %s141, %s144
      %p150 = scmp.eq.s32.totalorder %s16, 0
      %p151 = por %p149, %p150
      %p152 = scmp.ne.s32.totalorder %s141, %s144
      %p153 = scmp.eq.s32.totalorder %s21, 1
      %p154 = por %p152, %p153
      %p155 = scmp.ne.s32.totalorder %s144, %s145
      %p156 = scmp.eq.s32.totalorder %s21, 0
      %p157 = por %p155, %p156
      %p158 = scmp.ne.s32.totalorder %s144, %s145
      %p159 = scmp.eq.s32.totalorder %s22, 1
      %p160 = por %p158, %p159
      %p162 = scmp.ne.s32.totalorder %s145, %s161
      %p163 = scmp.eq.s32.totalorder %s22, 0
      %p164 = por %p162, %p163
      %p165 = scmp.le.s32.totalorder 1, %s16
      %p166 = scmp.lt.s32.totalorder %s16, 3
      %p167 = pnand %p165, %p166
      %p168 = pneg %p167
      // Predicated region
      $region9: #{bottleneck_forward.1} parent=5 // pred_check
        _
      $region10: #{bottleneck_forward.1} parent=5 // pred_check_branch
        %170 = sbr.rel (%p167) target = $region12
      $region11: #{bottleneck_forward.1} parent=5 // pred_region
        %s171 = ssub.s32 %s16, 1
        // Predicated region
        $region13: #{bottleneck_forward.1} parent=11 // pred_check
          %p172 = pneg %p63
        $region14: #{bottleneck_forward.1} parent=11 // pred_check_branch
          %174 = sbr.rel (%p172) target = $region16
        $region15: #{bottleneck_forward.1} parent=11 // pred_region
          %176 = vsyncadd [#allocation3], 0
          %s177 = sshll.u32 %s1, 4
          %s178 = int_to_ptr.hbm [resolvable:$true] %s177
          %s179 = sshll.u32 [#allocation2], 4
          %s180 = int_to_ptr.vmem [resolvable:$true] %s179
          %185 = dma.hbm_to_vmem [thread:$0]  %s178, 8192, %s180, [#allocation3], 128, 128, 8
        $region16: #{bottleneck_forward.1} parent=11 // pred_fallthru
          _
        // Predicated region
        $region17: #{bottleneck_forward.1} parent=11 // pred_check
          %p186 = pneg %p84
        $region18: #{bottleneck_forward.1} parent=11 // pred_check_branch
          %188 = sbr.rel (%p186) target = $region20
        $region19: #{bottleneck_forward.1} parent=11 // pred_region
          _
        $region20: #{bottleneck_forward.1} parent=11 // pred_fallthru
          _
        // Predicated region
        $region21: #{bottleneck_forward.1} parent=11 // pred_check
          %p189 = pneg %p105
        $region22: #{bottleneck_forward.1} parent=11 // pred_check_branch
          %191 = sbr.rel (%p189) target = $region24
        $region23: #{bottleneck_forward.1} parent=11 // pred_region
          _
        $region24: #{bottleneck_forward.1} parent=11 // pred_fallthru
          _
      $region12: #{bottleneck_forward.1} parent=5 // pred_fallthru
        _
      %p192 = scmp.lt.s32.totalorder %s16, 2
      // Predicated region
      $region25: #{bottleneck_forward.1} parent=5 // pred_check
        %p193 = pneg %p192
      $region26: #{bottleneck_forward.1} parent=5 // pred_check_branch
        %195 = sbr.rel (%p193) target = $region28
      $region27: #{bottleneck_forward.1} parent=5 // pred_region
        // Predicated region
        $region29: #{bottleneck_forward.1} parent=27 // pred_check
          %p196 = pneg %p36
        $region30: #{bottleneck_forward.1} parent=27 // pred_check_branch
          %198 = sbr.rel (%p196) target = $region32
        $region31: #{bottleneck_forward.1} parent=27 // pred_region
          %p199 = scmp.lt.s32.totalorder %s16, 1
          %s200 = scalar_select %p199, %s16, 1
          %s201 = smul.addr %s200, 4
          %s202 = smul.addr %s201, 4
          %s203 = scalar_lea.vmem %s0, %s202
        $region32: #{bottleneck_forward.1} parent=27 // pred_fallthru
          _
      $region28: #{bottleneck_forward.1} parent=5 // pred_fallthru
        _
      %p204 = scmp.le.s32.totalorder 1, %s16
      %p205 = scmp.lt.s32.totalorder %s16, 3
      %p206 = pnand %p204, %p205
      %p207 = pneg %p206
      // Predicated region
      $region33: #{bottleneck_forward.1} parent=5 // pred_check
        _
      $region34: #{bottleneck_forward.1} parent=5 // pred_check_branch
        %209 = sbr.rel (%p206) target = $region36
      $region35: #{bottleneck_forward.1} parent=5 // pred_region
        %s210 = ssub.s32 %s16, 1
        // Predicated region
        $region37: #{bottleneck_forward.1} parent=35 // pred_check
          %p211 = pneg %p63
        $region38: #{bottleneck_forward.1} parent=35 // pred_check_branch
          %213 = sbr.rel (%p211) target = $region40
        $region39: #{bottleneck_forward.1} parent=35 // pred_region
          %215 = dma.done [#allocation3], 8192
        $region40: #{bottleneck_forward.1} parent=35 // pred_fallthru
          _
        %p216 = scmp.lt.s32.totalorder %s21, 1
        %s217 = scalar_select %p216, %s21, 1
        %s218 = smul.addr %s217, 4
        %s219 = smul.addr %s218, 4
        %s220 = scalar_lea.vmem %s0, %s219
        %p221 = pneg %p42
        %p222 = pneg %p39
        %p223 = pneg %p63
        %p224 = pneg %p60
        %p225 = pneg %p84
        %p226 = pneg %p81
        %p227 = pneg %p105
        %p228 = pneg %p102
        %p229 = pneg %p131
        %p230 = pneg %p128
        %s231 = sand.u32 %s118, 1
        %s232 = scalar_lea.sflag [#allocation4], %s231
        %s233 = sand.u32 %s118, 1
        %s234 = smul.addr %s233, 8
        %s235 = scalar_lea.vmem [#allocation5], %s234
        %p236 = pneg %p157
        %p237 = pneg %p154
        %p238 = scmp.lt.s32.totalorder %s21, 1
        %s239 = scalar_select %p238, %s21, 1
        %s240 = smul.addr %s239, 8
        %s241 = scalar_lea.vmem %s5, %s240
        %p242 = scmp.lt.s32.totalorder %s21, 1
        %s243 = scalar_select %p242, %s21, 1
        %s244 = smul.addr %s243, 4
        %s245 = smul.addr %s244, 4
        %s246 = scalar_lea.vmem %s0, %s245
        %p247 = scmp.lt.s32.totalorder %s21, 1
        %s248 = scalar_select %p247, %s21, 1
        %s249 = smul.addr %s248, 8
        %s250 = scalar_lea.vmem %s5, %s249
        %v251 = vld [vmem:[%s246] sm:$0xff]
        %v252 = vld [vmem:[%s246 + $0x8] sm:$0xff]
        %v253 = vld [vmem:[#allocation2] sm:$0xff]
        %v254 = vld [vmem:[#allocation2 + $0x8] sm:$0xff]
        %v255 = vld [vmem:[#allocation2 + $0x10] sm:$0xff]
        %v256 = vld [vmem:[#allocation2 + $0x18] sm:$0xff]
        %v257 = vld [vmem:[#allocation2 + $0x20] sm:$0xff]
        %v258 = vld [vmem:[#allocation2 + $0x28] sm:$0xff]
        %v259 = vld [vmem:[#allocation2 + $0x30] sm:$0xff]
        %v260 = vld [vmem:[#allocation2 + $0x38] sm:$0xff]
        %v261 = vld [vmem:[#allocation2 + $0x40] sm:$0xff]
        %v262 = vld [vmem:[#allocation2 + $0x48] sm:$0xff]
        %v263 = vld [vmem:[#allocation2 + $0x50] sm:$0xff]
        %v264 = vld [vmem:[#allocation2 + $0x58] sm:$0xff]
        %v265 = vld [vmem:[#allocation2 + $0x60] sm:$0xff]
        %v266 = vld [vmem:[#allocation2 + $0x68] sm:$0xff]
        %v267 = vld [vmem:[#allocation2 + $0x70] sm:$0xff]
        %v268 = vld [vmem:[#allocation2 + $0x78] sm:$0xff]
        %v269 = vld [vmem:[#allocation2 + $0x80] sm:$0xff]
        %v270 = vld [vmem:[#allocation2 + $0x88] sm:$0xff]
        %v271 = vld [vmem:[#allocation2 + $0x90] sm:$0xff]
        %v272 = vld [vmem:[#allocation2 + $0x98] sm:$0xff]
        %v273 = vld [vmem:[#allocation2 + $0xa0] sm:$0xff]
        %v274 = vld [vmem:[#allocation2 + $0xa8] sm:$0xff]
        %v275 = vld [vmem:[#allocation2 + $0xb0] sm:$0xff]
        %v276 = vld [vmem:[#allocation2 + $0xb8] sm:$0xff]
        %v277 = vld [vmem:[#allocation2 + $0xc0] sm:$0xff]
        %v278 = vld [vmem:[#allocation2 + $0xc8] sm:$0xff]
        %v279 = vld [vmem:[#allocation2 + $0xd0] sm:$0xff]
        %v280 = vld [vmem:[#allocation2 + $0xd8] sm:$0xff]
        %v281 = vld [vmem:[#allocation2 + $0xe0] sm:$0xff]
        %v282 = vld [vmem:[#allocation2 + $0xe8] sm:$0xff]
        %v283 = vld [vmem:[#allocation2 + $0xf0] sm:$0xff]
        %v284 = vld [vmem:[#allocation2 + $0xf8] sm:$0xff]
        %v285 = vld [vmem:[#allocation2 + $0x100] sm:$0xff]
        %v286 = vld [vmem:[#allocation2 + $0x108] sm:$0xff]
        %v287 = vld [vmem:[#allocation2 + $0x110] sm:$0xff]
        %v288 = vld [vmem:[#allocation2 + $0x118] sm:$0xff]
        %v289 = vld [vmem:[#allocation2 + $0x120] sm:$0xff]
        %v290 = vld [vmem:[#allocation2 + $0x128] sm:$0xff]
        %v291 = vld [vmem:[#allocation2 + $0x130] sm:$0xff]
        %v292 = vld [vmem:[#allocation2 + $0x138] sm:$0xff]
        %v293 = vld [vmem:[#allocation2 + $0x140] sm:$0xff]
        %v294 = vld [vmem:[#allocation2 + $0x148] sm:$0xff]
        %v295 = vld [vmem:[#allocation2 + $0x150] sm:$0xff]
        %v296 = vld [vmem:[#allocation2 + $0x158] sm:$0xff]
        %v297 = vld [vmem:[#allocation2 + $0x160] sm:$0xff]
        %v298 = vld [vmem:[#allocation2 + $0x168] sm:$0xff]
        %v299 = vld [vmem:[#allocation2 + $0x170] sm:$0xff]
        %v300 = vld [vmem:[#allocation2 + $0x178] sm:$0xff]
        %v301 = vld [vmem:[#allocation2 + $0x180] sm:$0xff]
        %v302 = vld [vmem:[#allocation2 + $0x188] sm:$0xff]
        %v303 = vld [vmem:[#allocation2 + $0x190] sm:$0xff]
        %v304 = vld [vmem:[#allocation2 + $0x198] sm:$0xff]
        %v305 = vld [vmem:[#allocation2 + $0x1a0] sm:$0xff]
        %v306 = vld [vmem:[#allocation2 + $0x1a8] sm:$0xff]
        %v307 = vld [vmem:[#allocation2 + $0x1b0] sm:$0xff]
        %v308 = vld [vmem:[#allocation2 + $0x1b8] sm:$0xff]
        %v309 = vld [vmem:[#allocation2 + $0x1c0] sm:$0xff]
        %v310 = vld [vmem:[#allocation2 + $0x1c8] sm:$0xff]
        %v311 = vld [vmem:[#allocation2 + $0x1d0] sm:$0xff]
        %v312 = vld [vmem:[#allocation2 + $0x1d8] sm:$0xff]
        %v313 = vld [vmem:[#allocation2 + $0x1e0] sm:$0xff]
        %v314 = vld [vmem:[#allocation2 + $0x1e8] sm:$0xff]
        %v315 = vld [vmem:[#allocation2 + $0x1f0] sm:$0xff]
        %v316 = vld [vmem:[#allocation2 + $0x1f8] sm:$0xff]
        %v319 = vunpack.c.l.b16 %v251
        %v320 = vunpack.c.h.b16 %v251
        %v321 = vunpack.c.l.b16 %v252
        %v322 = vunpack.c.h.b16 %v252
        %v323 = vpack.c.b16 %v319, %v319
        %v324 = vpack.c.b16 %v320, %v320
        %v325 = vpack.c.b16 %v321, %v321
        %v326 = vpack.c.b16 %v322, %v322
        %v395 = vunpack.c.l.b16 %v253
        %v396 = vunpack.c.h.b16 %v253
        %v397 = vunpack.c.l.b16 %v254
        %v398 = vunpack.c.h.b16 %v254
        %v399 = vunpack.c.l.b16 %v255
        %v400 = vunpack.c.h.b16 %v255
        %v401 = vunpack.c.l.b16 %v256
        %v402 = vunpack.c.h.b16 %v256
        %v403 = vunpack.c.l.b16 %v257
        %v404 = vunpack.c.h.b16 %v257
        %v405 = vunpack.c.l.b16 %v258
        %v406 = vunpack.c.h.b16 %v258
        %v407 = vunpack.c.l.b16 %v259
        %v408 = vunpack.c.h.b16 %v259
        %v409 = vunpack.c.l.b16 %v260
        %v410 = vunpack.c.h.b16 %v260
        %v411 = vunpack.c.l.b16 %v261
        %v412 = vunpack.c.h.b16 %v261
        %v413 = vunpack.c.l.b16 %v262
        %v414 = vunpack.c.h.b16 %v262
        %v415 = vunpack.c.l.b16 %v263
        %v416 = vunpack.c.h.b16 %v263
        %v417 = vunpack.c.l.b16 %v264
        %v418 = vunpack.c.h.b16 %v264
        %v419 = vunpack.c.l.b16 %v265
        %v420 = vunpack.c.h.b16 %v265
        %v421 = vunpack.c.l.b16 %v266
        %v422 = vunpack.c.h.b16 %v266
        %v423 = vunpack.c.l.b16 %v267
        %v424 = vunpack.c.h.b16 %v267
        %v425 = vunpack.c.l.b16 %v268
        %v426 = vunpack.c.h.b16 %v268
        %v427 = vunpack.c.l.b16 %v269
        %v428 = vunpack.c.h.b16 %v269
        %v429 = vunpack.c.l.b16 %v270
        %v430 = vunpack.c.h.b16 %v270
        %v431 = vunpack.c.l.b16 %v271
        %v432 = vunpack.c.h.b16 %v271
        %v433 = vunpack.c.l.b16 %v272
        %v434 = vunpack.c.h.b16 %v272
        %v435 = vunpack.c.l.b16 %v273
        %v436 = vunpack.c.h.b16 %v273
        %v437 = vunpack.c.l.b16 %v274
        %v438 = vunpack.c.h.b16 %v274
        %v439 = vunpack.c.l.b16 %v275
        %v440 = vunpack.c.h.b16 %v275
        %v441 = vunpack.c.l.b16 %v276
        %v442 = vunpack.c.h.b16 %v276
        %v443 = vunpack.c.l.b16 %v277
        %v444 = vunpack.c.h.b16 %v277
        %v445 = vunpack.c.l.b16 %v278
        %v446 = vunpack.c.h.b16 %v278
        %v447 = vunpack.c.l.b16 %v279
        %v448 = vunpack.c.h.b16 %v279
        %v449 = vunpack.c.l.b16 %v280
        %v450 = vunpack.c.h.b16 %v280
        %v451 = vunpack.c.l.b16 %v281
        %v452 = vunpack.c.h.b16 %v281
        %v453 = vunpack.c.l.b16 %v282
        %v454 = vunpack.c.h.b16 %v282
        %v455 = vunpack.c.l.b16 %v283
        %v456 = vunpack.c.h.b16 %v283
        %v457 = vunpack.c.l.b16 %v284
        %v458 = vunpack.c.h.b16 %v284
        %v459 = vunpack.c.l.b16 %v285
        %v460 = vunpack.c.h.b16 %v285
        %v461 = vunpack.c.l.b16 %v286
        %v462 = vunpack.c.h.b16 %v286
        %v463 = vunpack.c.l.b16 %v287
        %v464 = vunpack.c.h.b16 %v287
        %v465 = vunpack.c.l.b16 %v288
        %v466 = vunpack.c.h.b16 %v288
        %v467 = vunpack.c.l.b16 %v289
        %v468 = vunpack.c.h.b16 %v289
        %v469 = vunpack.c.l.b16 %v290
        %v470 = vunpack.c.h.b16 %v290
        %v471 = vunpack.c.l.b16 %v291
        %v472 = vunpack.c.h.b16 %v291
        %v473 = vunpack.c.l.b16 %v292
        %v474 = vunpack.c.h.b16 %v292
        %v475 = vunpack.c.l.b16 %v293
        %v476 = vunpack.c.h.b16 %v293
        %v477 = vunpack.c.l.b16 %v294
        %v478 = vunpack.c.h.b16 %v294
        %v479 = vunpack.c.l.b16 %v295
        %v480 = vunpack.c.h.b16 %v295
        %v481 = vunpack.c.l.b16 %v296
        %v482 = vunpack.c.h.b16 %v296
        %v483 = vunpack.c.l.b16 %v297
        %v484 = vunpack.c.h.b16 %v297
        %v485 = vunpack.c.l.b16 %v298
        %v486 = vunpack.c.h.b16 %v298
        %v487 = vunpack.c.l.b16 %v299
        %v488 = vunpack.c.h.b16 %v299
        %v489 = vunpack.c.l.b16 %v300
        %v490 = vunpack.c.h.b16 %v300
        %v491 = vunpack.c.l.b16 %v301
        %v492 = vunpack.c.h.b16 %v301
        %v493 = vunpack.c.l.b16 %v302
        %v494 = vunpack.c.h.b16 %v302
        %v495 = vunpack.c.l.b16 %v303
        %v496 = vunpack.c.h.b16 %v303
        %v497 = vunpack.c.l.b16 %v304
        %v498 = vunpack.c.h.b16 %v304
        %v499 = vunpack.c.l.b16 %v305
        %v500 = vunpack.c.h.b16 %v305
        %v501 = vunpack.c.l.b16 %v306
        %v502 = vunpack.c.h.b16 %v306
        %v503 = vunpack.c.l.b16 %v307
        %v504 = vunpack.c.h.b16 %v307
        %v505 = vunpack.c.l.b16 %v308
        %v506 = vunpack.c.h.b16 %v308
        %v507 = vunpack.c.l.b16 %v309
        %v508 = vunpack.c.h.b16 %v309
        %v509 = vunpack.c.l.b16 %v310
        %v510 = vunpack.c.h.b16 %v310
        %v511 = vunpack.c.l.b16 %v311
        %v512 = vunpack.c.h.b16 %v311
        %v513 = vunpack.c.l.b16 %v312
        %v514 = vunpack.c.h.b16 %v312
        %v515 = vunpack.c.l.b16 %v313
        %v516 = vunpack.c.h.b16 %v313
        %v517 = vunpack.c.l.b16 %v314
        %v518 = vunpack.c.h.b16 %v314
        %v519 = vunpack.c.l.b16 %v315
        %v520 = vunpack.c.h.b16 %v315
        %v521 = vunpack.c.l.b16 %v316
        %v522 = vunpack.c.h.b16 %v316
        %v523 = vpack.c.b16 %v397, %v395
        %v524 = vpack.c.b16 %v398, %v396
        %v525 = vpack.c.b16 %v401, %v399
        %v526 = vpack.c.b16 %v402, %v400
        %v527 = vpack.c.b16 %v405, %v403
        %v528 = vpack.c.b16 %v406, %v404
        %v529 = vpack.c.b16 %v409, %v407
        %v530 = vpack.c.b16 %v410, %v408
        %v531 = vpack.c.b16 %v413, %v411
        %v532 = vpack.c.b16 %v414, %v412
        %v533 = vpack.c.b16 %v417, %v415
        %v534 = vpack.c.b16 %v418, %v416
        %v535 = vpack.c.b16 %v421, %v419
        %v536 = vpack.c.b16 %v422, %v420
        %v537 = vpack.c.b16 %v425, %v423
        %v538 = vpack.c.b16 %v426, %v424
        %v539 = vpack.c.b16 %v429, %v427
        %v540 = vpack.c.b16 %v430, %v428
        %v541 = vpack.c.b16 %v433, %v431
        %v542 = vpack.c.b16 %v434, %v432
        %v543 = vpack.c.b16 %v437, %v435
        %v544 = vpack.c.b16 %v438, %v436
        %v545 = vpack.c.b16 %v441, %v439
        %v546 = vpack.c.b16 %v442, %v440
        %v547 = vpack.c.b16 %v445, %v443
        %v548 = vpack.c.b16 %v446, %v444
        %v549 = vpack.c.b16 %v449, %v447
        %v550 = vpack.c.b16 %v450, %v448
        %v551 = vpack.c.b16 %v453, %v451
        %v552 = vpack.c.b16 %v454, %v452
        %v553 = vpack.c.b16 %v457, %v455
        %v554 = vpack.c.b16 %v458, %v456
        %v555 = vpack.c.b16 %v461, %v459
        %v556 = vpack.c.b16 %v462, %v460
        %v557 = vpack.c.b16 %v465, %v463
        %v558 = vpack.c.b16 %v466, %v464
        %v559 = vpack.c.b16 %v469, %v467
        %v560 = vpack.c.b16 %v470, %v468
        %v561 = vpack.c.b16 %v473, %v471
        %v562 = vpack.c.b16 %v474, %v472
        %v563 = vpack.c.b16 %v477, %v475
        %v564 = vpack.c.b16 %v478, %v476
        %v565 = vpack.c.b16 %v481, %v479
        %v566 = vpack.c.b16 %v482, %v480
        %v567 = vpack.c.b16 %v485, %v483
        %v568 = vpack.c.b16 %v486, %v484
        %v569 = vpack.c.b16 %v489, %v487
        %v570 = vpack.c.b16 %v490, %v488
        %v571 = vpack.c.b16 %v493, %v491
        %v572 = vpack.c.b16 %v494, %v492
        %v573 = vpack.c.b16 %v497, %v495
        %v574 = vpack.c.b16 %v498, %v496
        %v575 = vpack.c.b16 %v501, %v499
        %v576 = vpack.c.b16 %v502, %v500
        %v577 = vpack.c.b16 %v505, %v503
        %v578 = vpack.c.b16 %v506, %v504
        %v579 = vpack.c.b16 %v509, %v507
        %v580 = vpack.c.b16 %v510, %v508
        %v581 = vpack.c.b16 %v513, %v511
        %v582 = vpack.c.b16 %v514, %v512
        %v583 = vpack.c.b16 %v517, %v515
        %v584 = vpack.c.b16 %v518, %v516
        %v585 = vpack.c.b16 %v521, %v519
        %v586 = vpack.c.b16 %v522, %v520
        %651 = vmatpush.bf16.msra.mxu0 %v537
        %652 = vmatpush.bf16.msra.mxu0 %v535
        %653 = vmatpush.bf16.msra.mxu0 %v533
        %654 = vmatpush.bf16.msra.mxu0 %v531
        %655 = vmatpush.bf16.msra.mxu0 %v529
        %656 = vmatpush.bf16.msra.mxu0 %v527
        %657 = vmatpush.bf16.msra.mxu0 %v525
        %658 = vmatpush.bf16.msra.mxu0 %v523
        %659 = vmatmul.bf16.gmra.mxu0 %v323
        %v660 = vpop.f32.mrf.mxu0
        %v661 = vadd.f32 0.0, %v660
        %v662 = vpop.f32.mrf.mxu0
        %663 = vdwg.mxu0
        %664 = vmatpush.bf16.msra.mxu0 %v553
        %665 = vmatpush.bf16.msra.mxu0 %v551
        %666 = vmatpush.bf16.msra.mxu0 %v549
        %667 = vmatpush.bf16.msra.mxu0 %v547
        %668 = vmatpush.bf16.msra.mxu0 %v545
        %669 = vmatpush.bf16.msra.mxu0 %v543
        %670 = vmatpush.bf16.msra.mxu0 %v541
        %671 = vmatpush.bf16.msra.mxu0 %v539
        %672 = vmatmul.bf16.gmra.mxu0 %v324
        %v673 = vpop.f32.mrf.mxu0
        %v674 = vadd.f32 %v661, %v673
        %v675 = vpop.f32.mrf.mxu0
        %676 = vdwg.mxu0
        %677 = vmatpush.bf16.msra.mxu0 %v569
        %678 = vmatpush.bf16.msra.mxu0 %v567
        %679 = vmatpush.bf16.msra.mxu0 %v565
        %680 = vmatpush.bf16.msra.mxu0 %v563
        %681 = vmatpush.bf16.msra.mxu0 %v561
        %682 = vmatpush.bf16.msra.mxu0 %v559
        %683 = vmatpush.bf16.msra.mxu0 %v557
        %684 = vmatpush.bf16.msra.mxu0 %v555
        %685 = vmatmul.bf16.gmra.mxu0 %v325
        %v686 = vpop.f32.mrf.mxu0
        %v687 = vadd.f32 %v674, %v686
        %v688 = vpop.f32.mrf.mxu0
        %689 = vdwg.mxu0
        %690 = vmatpush.bf16.msra.mxu0 %v585
        %691 = vmatpush.bf16.msra.mxu0 %v583
        %692 = vmatpush.bf16.msra.mxu0 %v581
        %693 = vmatpush.bf16.msra.mxu0 %v579
        %694 = vmatpush.bf16.msra.mxu0 %v577
        %695 = vmatpush.bf16.msra.mxu0 %v575
        %696 = vmatpush.bf16.msra.mxu0 %v573
        %697 = vmatpush.bf16.msra.mxu0 %v571
        %698 = vmatmul.bf16.gmra.mxu0 %v326
        %v699 = vpop.f32.mrf.mxu0
        %v700 = vadd.f32 %v687, %v699
        %v701 = vpop.f32.mrf.mxu0
        %702 = vdwg.mxu0
        %703 = vmatpush.bf16.msra.mxu0 %v538
        %704 = vmatpush.bf16.msra.mxu0 %v536
        %705 = vmatpush.bf16.msra.mxu0 %v534
        %706 = vmatpush.bf16.msra.mxu0 %v532
        %707 = vmatpush.bf16.msra.mxu0 %v530
        %708 = vmatpush.bf16.msra.mxu0 %v528
        %709 = vmatpush.bf16.msra.mxu0 %v526
        %710 = vmatpush.bf16.msra.mxu0 %v524
        %711 = vmatmul.bf16.gmra.mxu0 %v323
        %v712 = vpop.f32.mrf.mxu0
        %v713 = vadd.f32 0.0, %v712
        %v714 = vpop.f32.mrf.mxu0
        %715 = vdwg.mxu0
        %716 = vmatpush.bf16.msra.mxu0 %v554
        %717 = vmatpush.bf16.msra.mxu0 %v552
        %718 = vmatpush.bf16.msra.mxu0 %v550
        %719 = vmatpush.bf16.msra.mxu0 %v548
        %720 = vmatpush.bf16.msra.mxu0 %v546
        %721 = vmatpush.bf16.msra.mxu0 %v544
        %722 = vmatpush.bf16.msra.mxu0 %v542
        %723 = vmatpush.bf16.msra.mxu0 %v540
        %724 = vmatmul.bf16.gmra.mxu0 %v324
        %v725 = vpop.f32.mrf.mxu0
        %v726 = vadd.f32 %v713, %v725
        %v727 = vpop.f32.mrf.mxu0
        %728 = vdwg.mxu0
        %729 = vmatpush.bf16.msra.mxu0 %v570
        %730 = vmatpush.bf16.msra.mxu0 %v568
        %731 = vmatpush.bf16.msra.mxu0 %v566
        %732 = vmatpush.bf16.msra.mxu0 %v564
        %733 = vmatpush.bf16.msra.mxu0 %v562
        %734 = vmatpush.bf16.msra.mxu0 %v560
        %735 = vmatpush.bf16.msra.mxu0 %v558
        %736 = vmatpush.bf16.msra.mxu0 %v556
        %737 = vmatmul.bf16.gmra.mxu0 %v325
        %v738 = vpop.f32.mrf.mxu0
        %v739 = vadd.f32 %v726, %v738
        %v740 = vpop.f32.mrf.mxu0
        %741 = vdwg.mxu0
        %742 = vmatpush.bf16.msra.mxu0 %v586
        %743 = vmatpush.bf16.msra.mxu0 %v584
        %744 = vmatpush.bf16.msra.mxu0 %v582
        %745 = vmatpush.bf16.msra.mxu0 %v580
        %746 = vmatpush.bf16.msra.mxu0 %v578
        %747 = vmatpush.bf16.msra.mxu0 %v576
        %748 = vmatpush.bf16.msra.mxu0 %v574
        %749 = vmatpush.bf16.msra.mxu0 %v572
        %750 = vmatmul.bf16.gmra.mxu0 %v326
        %v751 = vpop.f32.mrf.mxu0
        %v752 = vadd.f32 %v739, %v751
        %v753 = vpop.f32.mrf.mxu0
        %754 = vdwg.mxu0
        %v755 = vld [vmem:[%s2] sm:$0x3]
        %v757 = vperm.slane %v755, 0
        %v758 = vperm.slane %v755, 1
        %v761 = vmul.f32 %v700, %v757
        %v762 = vmul.f32 %v752, %v758
        %v763 = vld [vmem:[%s3] sm:$0x3]
        %v765 = vperm.slane %v763, 0
        %v766 = vperm.slane %v763, 1
        %v769 = vadd.f32 %v761, %v765
        %v770 = vadd.f32 %v762, %v766
        %771 = vst [vmem:[%s235] sm:$0xff] %v769
        %772 = vst [vmem:[%s250] sm:$0xff] %v770
        %s773 = sand.u32 %s118, 1
        %s774 = scalar_lea.sflag [#allocation4], %s773
        %s775 = sand.u32 %s118, 1
        %s776 = smul.addr %s775, 8
        %s777 = scalar_lea.vmem [#allocation5], %s776
        %p778 = scmp.lt.s32.totalorder %s21, 1
        %s779 = scalar_select %p778, %s21, 1
        %s780 = smul.addr %s779, 8
        %s781 = scalar_lea.vmem %s5, %s780
        // Predicated region
        $region41: #{bottleneck_forward.1} parent=35 // pred_check
          %p782 = pneg %p128
        $region42: #{bottleneck_forward.1} parent=35 // pred_check_branch
          %784 = sbr.rel (%p782) target = $region44
        $region43: #{bottleneck_forward.1} parent=35 // pred_region
          %786 = vsyncadd %s774, 0
          %s787 = smul.addr %s21, 8
          %s788 = scalar_lea.hbm %s4, %s787
          %s790 = sshll.u32 %s777, 4
          %s791 = int_to_ptr.vmem [resolvable:$true] %s790
          %s792 = sshll.u32 %s788, 4
          %s793 = int_to_ptr.hbm [resolvable:$true] %s792
          %795 = dma.vmem_to_hbm [thread:$0]  %s791, 128, %s793, %s774
        $region44: #{bottleneck_forward.1} parent=35 // pred_fallthru
          _
        // Predicated region
        $region45: #{bottleneck_forward.1} parent=35 // pred_check
          %p796 = pneg %p154
        $region46: #{bottleneck_forward.1} parent=35 // pred_check_branch
          %798 = sbr.rel (%p796) target = $region48
        $region47: #{bottleneck_forward.1} parent=35 // pred_region
          _
        $region48: #{bottleneck_forward.1} parent=35 // pred_fallthru
          _
      $region36: #{bottleneck_forward.1} parent=5 // pred_fallthru
        _
      %p799 = scmp.le.s32.totalorder 2, %s16
      // Predicated region
      $region49: #{bottleneck_forward.1} parent=5 // pred_check
        %p800 = pneg %p799
      $region50: #{bottleneck_forward.1} parent=5 // pred_check_branch
        %802 = sbr.rel (%p800) target = $region52
      $region51: #{bottleneck_forward.1} parent=5 // pred_region
        %s803 = ssub.s32 %s16, 2
        // Predicated region
        $region53: #{bottleneck_forward.1} parent=51 // pred_check
          %p804 = pneg %p134
        $region54: #{bottleneck_forward.1} parent=51 // pred_check_branch
          %806 = sbr.rel (%p804) target = $region56
        $region55: #{bottleneck_forward.1} parent=51 // pred_region
          %s807 = sand.u32 %s119, 1
          %s808 = scalar_lea.sflag [#allocation4], %s807
          %s809 = sand.u32 %s119, 1
          %s810 = smul.addr %s809, 8
          %s811 = scalar_lea.vmem [#allocation5], %s810
          %813 = dma.done %s808, 128
        $region56: #{bottleneck_forward.1} parent=51 // pred_fallthru
          _
        // Predicated region
        $region57: #{bottleneck_forward.1} parent=51 // pred_check
          %p814 = pneg %p160
        $region58: #{bottleneck_forward.1} parent=51 // pred_check_branch
          %816 = sbr.rel (%p814) target = $region60
        $region59: #{bottleneck_forward.1} parent=51 // pred_region
          %p817 = scmp.lt.s32.totalorder %s22, 1
          %s818 = scalar_select %p817, %s22, 1
          %s819 = smul.addr %s818, 8
          %s820 = scalar_lea.vmem %s5, %s819
        $region60: #{bottleneck_forward.1} parent=51 // pred_fallthru
          _
      $region52: #{bottleneck_forward.1} parent=5 // pred_fallthru
        _
    $region6: #{bottleneck_forward.1} parent=1 // loop_footer
      %s20 = sadd.s32 1, %s16
    $region7: #{bottleneck_forward.1} parent=1 // loop_footer_branch
      %15 = sbr.rel target = $region3
    $region8: #{bottleneck_forward.1} parent=1 // loop_exit
      _
    %821 = vsyncpa [#allocation3], 1
    %s822 = scalar_lea.sflag [#allocation3], 1
    %823 = vsyncpa %s822, 1
    %824 = vsyncpa [#allocation4], 1
    %s825 = scalar_lea.sflag [#allocation4], 1
    %826 = vsyncpa %s825, 1

</llo_original>
